<compile_context>
chip_gen: v7x
topology: tpu7x:2x2x1
jax: 0.10.0
libtpu: 0.0.40
codegen_flags: <defaults>
</compile_context>

<pallas_src>
import functools

import jax
import jax.numpy as jnp
from jax.experimental import pallas as pl
from jax.experimental.pallas import tpu as pltpu

LANE = 128
BN_EPS = 1e-5


def _round_up(x, m):
    return ((x + m - 1) // m) * m


# --------------------------- Pallas kernel ----------------------------------
def _pos_extraction_kernel(x_ref, w1_ref, b1_ref, w2_ref, b2_ref, o_ref, *, blocks):
    """Fused PosExtraction on one [TM, Cpad] row tile.

    x_ref : [TM, Cpad]          f32 activations (channel-last, lane-padded)
    w1_ref: [blocks, Cpad, Cpad] bf16  (BN scale folded in)
    b1_ref: [blocks, 1, Cpad]    f32   (folded BN shift)
    w2_ref/b2_ref: same for the second conv of each block
    """
    x = x_ref[...].astype(jnp.float32)
    for blk in range(blocks):  # static unroll; weights stay resident in VMEM
        # net1: Conv1d(k=1) + folded BN + ReLU
        y = jnp.dot(x.astype(jnp.bfloat16), w1_ref[blk],
                    preferred_element_type=jnp.float32)
        y = jnp.maximum(y + b1_ref[blk], 0.0)
        # net2: Conv1d(k=1) + folded BN, then residual + ReLU
        z = jnp.dot(y.astype(jnp.bfloat16), w2_ref[blk],
                    preferred_element_type=jnp.float32)
        x = jnp.maximum(z + b2_ref[blk] + x, 0.0)
    o_ref[...] = x


# --------------------------- wrapper -----------------------------------------
def pos_extraction_forward(x_bdg, folded):
    """x_bdg: [B, D, G] (PyTorch NCL layout). Returns [B, D, G]."""
    Bn, D, G = x_bdg.shape
    blocks = folded["w1"].shape[0]
    Cpad = folded["w1"].shape[1]

    # channel-last rows: points on the sublane axis, channels on the lane axis
    x = jnp.transpose(x_bdg, (0, 2, 1)).reshape(Bn * G, D).astype(jnp.float32)
    M = Bn * G
    TM = LANE
    Mpad = _round_up(M, TM)
    x = jnp.pad(x, ((0, Mpad - M), (0, Cpad - D)))

    out = pl.pallas_call(
        functools.partial(_pos_extraction_kernel, blocks=blocks),
        out_shape=jax.ShapeDtypeStruct((Mpad, Cpad), jnp.float32),
        grid=(Mpad // TM,),
        in_specs=[
            pl.BlockSpec((TM, Cpad), lambda i: (i, 0)),                 # x tile
            pl.BlockSpec((blocks, Cpad, Cpad), lambda i: (0, 0, 0)),     # w1 (resident)
            pl.BlockSpec((blocks, 1, Cpad), lambda i: (0, 0, 0)),        # b1
            pl.BlockSpec((blocks, Cpad, Cpad), lambda i: (0, 0, 0)),     # w2
            pl.BlockSpec((blocks, 1, Cpad), lambda i: (0, 0, 0)),        # b2
        ],
        out_specs=pl.BlockSpec((TM, Cpad), lambda i: (i, 0)),
        compiler_params=pltpu.CompilerParams(
            dimension_semantics=("parallel",)),   # v7x: shard tiles over 2 TCs
    )(x, folded["w1"], folded["b1"], folded["w2"], folded["b2"])

    out = out[:M, :D].reshape(Bn, G, D)
    return jnp.transpose(out, (0, 2, 1))


# --------------------------- parameters --------------------------------------
def _conv_bn_params(key, cin, cout):
    kw, kb, kg, kbe, km, kv = jax.random.split(key, 6)
    return {
        "w": jax.random.normal(kw, (cout, cin), jnp.float32) / jnp.sqrt(float(cin)),
        "b": 0.05 * jax.random.normal(kb, (cout,), jnp.float32),
        "gamma": 1.0 + 0.1 * jax.random.normal(kg, (cout,), jnp.float32),
        "beta": 0.05 * jax.random.normal(kbe, (cout,), jnp.float32),
        "mean": 0.05 * jax.random.normal(km, (cout,), jnp.float32),
        "var": jnp.abs(1.0 + 0.1 * jax.random.normal(kv, (cout,), jnp.float32)),
    }


def init_block_params(key, channel, res_expansion=1.0):
    mid = int(channel * res_expansion)
    k1, k2 = jax.random.split(key)
    return {"net1": _conv_bn_params(k1, channel, mid),
            "net2": _conv_bn_params(k2, mid, channel)}


def fold_and_pad(blocks_params, channel, res_expansion=1.0):
    """Fold BN into conv weights and zero-pad channels to a lane-dense 128."""
    mid = int(channel * res_expansion)
    Cpad = _round_up(max(channel, mid, LANE), LANE)
    stacks = {"w1": [], "b1": [], "w2": [], "b2": []}
    for bp in blocks_params:
        for name, cin, cout, wk, bk in (("net1", channel, mid, "w1", "b1"),
                                        ("net2", mid, channel, "w2", "b2")):
            p = bp[name]
            scale = p["gamma"] / jnp.sqrt(p["var"] + BN_EPS)
            w_eff = (p["w"] * scale[:, None]).T                      # [cin, cout]
            b_eff = (p["b"] - p["mean"]) * scale + p["beta"]         # [cout]
            w_pad = jnp.zeros((Cpad, Cpad), jnp.float32).at[:cin, :cout].set(w_eff)
            b_pad = jnp.zeros((1, Cpad), jnp.float32).at[0, :cout].set(b_eff)
            stacks[wk].append(w_pad.astype(jnp.bfloat16))
            stacks[bk].append(b_pad)
    return {k: jnp.stack(v) for k, v in stacks.items()}


# --------------------------- pure-JAX reference -------------------------------
def reference_forward(x_bdg, blocks_params):
    """Faithful fp32 re-implementation of PosExtraction (eval-mode BN)."""
    x = jnp.transpose(x_bdg, (0, 2, 1))  # [B, G, C]

    def conv_bn(h, p):
        h = jnp.einsum("bgc,oc->bgo", h, p["w"]) + p["b"]
        return (h - p["mean"]) / jnp.sqrt(p["var"] + BN_EPS) * p["gamma"] + p["beta"]

    for bp in blocks_params:
        res = x
        h = jax.nn.relu(conv_bn(x, bp["net1"]))
        h = conv_bn(h, bp["net2"])
        x = jax.nn.relu(h + res)
    return jnp.transpose(x, (0, 2, 1))


# --------------------------- main ---------------------------------------------
if __name__ == "__main__":
    key = jax.random.PRNGKey(0)
    kx, kp = jax.random.split(key)

    Bn, C, G = 2, 64, 64      # [b, d, g] as in the module docstring
    BLOCKS = 2                # PosExtraction(channels=64, blocks=2)

    x = jax.random.normal(kx, (Bn, C, G), jnp.float32)
    blocks_params = [init_block_params(k, C) for k in jax.random.split(kp, BLOCKS)]
    folded = fold_and_pad(blocks_params, C)

    out = pos_extraction_forward(x, folded)
    out = jax.block_until_ready(out)
    assert out.shape == (Bn, C, G)

    ref = reference_forward(x, blocks_params)
    max_err = jnp.max(jnp.abs(out - ref))
    rel_err = max_err / (jnp.max(jnp.abs(ref)) + 1e-6)
    assert jnp.isfinite(max_err) and rel_err < 3e-2, f"mismatch: abs={max_err}, rel={rel_err}"

    print("KERNEL_OK")
</pallas_src>

<mosaic_0001>
module attributes {stable_mosaic.version = 11 : i64} {
  func.func @_pos_extraction_kernel(%arg0: i32, %arg1: memref<128x128xf32, #tpu.memory_space<vmem>>, %arg2: memref<2x128x128xbf16, #tpu.memory_space<vmem>>, %arg3: memref<2x1x128xf32, #tpu.memory_space<vmem>>, %arg4: memref<2x128x128xbf16, #tpu.memory_space<vmem>>, %arg5: memref<2x1x128xf32, #tpu.memory_space<vmem>>, %arg6: memref<128x128xf32, #tpu.memory_space<vmem>>) attributes {dimension_semantics = [#tpu.dimension_semantics<parallel>], iteration_bounds = array<i64: 1>, scalar_prefetch = 0 : i64, scratch_operands = 0 : i64, tpu.core_type = #tpu.core_type<tc>, window_params = [{transform_indices = @transform_0, window_bounds = array<i64: 128, 128>}, {pipeline_mode = #tpu.pipeline_mode<synchronous>, transform_indices = @transform_1, window_bounds = array<i64: 2, 128, 128>}, {pipeline_mode = #tpu.pipeline_mode<synchronous>, transform_indices = @transform_2, window_bounds = array<i64: 2, 1, 128>}, {pipeline_mode = #tpu.pipeline_mode<synchronous>, transform_indices = @transform_3, window_bounds = array<i64: 2, 128, 128>}, {pipeline_mode = #tpu.pipeline_mode<synchronous>, transform_indices = @transform_4, window_bounds = array<i64: 2, 1, 128>}, {transform_indices = @transform_5, window_bounds = array<i64: 128, 128>}]} {
    %c0 = arith.constant 0 : index
    %c0_0 = arith.constant 0 : index
    %0 = vector.load %arg1[%c0, %c0_0] : memref<128x128xf32, #tpu.memory_space<vmem>>, vector<128x128xf32>
    %1 = arith.truncf %0 : vector<128x128xf32> to vector<128x128xbf16>
    %c0_1 = arith.constant 0 : index
    %c0_2 = arith.constant 0 : index
    %c0_3 = arith.constant 0 : index
    %2 = vector.load %arg2[%c0_1, %c0_2, %c0_3] : memref<2x128x128xbf16, #tpu.memory_space<vmem>>, vector<1x128x128xbf16>
    %3 = vector.shape_cast %2 : vector<1x128x128xbf16> to vector<128x128xbf16>
    %cst = arith.constant dense<0.000000e+00> : vector<128x128xf32>
    %4 = tpu.matmul %1, %3, %cst {dimension_numbers = #tpu.dot_dimension_numbers<[1], [0], [0], [1], [0, 0, 1, 1], [], []>} : vector<128x128xbf16>, vector<128x128xbf16>, vector<128x128xf32> -> vector<128x128xf32>
    %c0_4 = arith.constant 0 : index
    %c0_5 = arith.constant 0 : index
    %c0_6 = arith.constant 0 : index
    %5 = vector.load %arg3[%c0_4, %c0_5, %c0_6] : memref<2x1x128xf32, #tpu.memory_space<vmem>>, vector<1x1x128xf32>
    %6 = vector.shape_cast %5 : vector<1x1x128xf32> to vector<1x128xf32>
    %7 = vector.broadcast %6 : vector<1x128xf32> to vector<128x128xf32>
    %8 = arith.addf %4, %7 : vector<128x128xf32>
    %cst_7 = arith.constant 0.000000e+00 : f32
    %9 = vector.broadcast %cst_7 : f32 to vector<128x128xf32>
    %10 = arith.maximumf %8, %9 : vector<128x128xf32>
    %11 = arith.truncf %10 : vector<128x128xf32> to vector<128x128xbf16>
    %c0_8 = arith.constant 0 : index
    %c0_9 = arith.constant 0 : index
    %c0_10 = arith.constant 0 : index
    %12 = vector.load %arg4[%c0_8, %c0_9, %c0_10] : memref<2x128x128xbf16, #tpu.memory_space<vmem>>, vector<1x128x128xbf16>
    %13 = vector.shape_cast %12 : vector<1x128x128xbf16> to vector<128x128xbf16>
    %cst_11 = arith.constant dense<0.000000e+00> : vector<128x128xf32>
    %14 = tpu.matmul %11, %13, %cst_11 {dimension_numbers = #tpu.dot_dimension_numbers<[1], [0], [0], [1], [0, 0, 1, 1], [], []>} : vector<128x128xbf16>, vector<128x128xbf16>, vector<128x128xf32> -> vector<128x128xf32>
    %c0_12 = arith.constant 0 : index
    %c0_13 = arith.constant 0 : index
    %c0_14 = arith.constant 0 : index
    %15 = vector.load %arg5[%c0_12, %c0_13, %c0_14] : memref<2x1x128xf32, #tpu.memory_space<vmem>>, vector<1x1x128xf32>
    %16 = vector.shape_cast %15 : vector<1x1x128xf32> to vector<1x128xf32>
    %17 = vector.broadcast %16 : vector<1x128xf32> to vector<128x128xf32>
    %18 = arith.addf %14, %17 : vector<128x128xf32>
    %19 = arith.addf %18, %0 : vector<128x128xf32>
    %cst_15 = arith.constant 0.000000e+00 : f32
    %20 = vector.broadcast %cst_15 : f32 to vector<128x128xf32>
    %21 = arith.maximumf %19, %20 : vector<128x128xf32>
    %22 = arith.truncf %21 : vector<128x128xf32> to vector<128x128xbf16>
    %c1 = arith.constant 1 : index
    %c0_16 = arith.constant 0 : index
    %c0_17 = arith.constant 0 : index
    %23 = vector.load %arg2[%c1, %c0_16, %c0_17] : memref<2x128x128xbf16, #tpu.memory_space<vmem>>, vector<1x128x128xbf16>
    %24 = vector.shape_cast %23 : vector<1x128x128xbf16> to vector<128x128xbf16>
    %cst_18 = arith.constant dense<0.000000e+00> : vector<128x128xf32>
    %25 = tpu.matmul %22, %24, %cst_18 {dimension_numbers = #tpu.dot_dimension_numbers<[1], [0], [0], [1], [0, 0, 1, 1], [], []>} : vector<128x128xbf16>, vector<128x128xbf16>, vector<128x128xf32> -> vector<128x128xf32>
    %c1_19 = arith.constant 1 : index
    %c0_20 = arith.constant 0 : index
    %c0_21 = arith.constant 0 : index
    %26 = vector.load %arg3[%c1_19, %c0_20, %c0_21] : memref<2x1x128xf32, #tpu.memory_space<vmem>>, vector<1x1x128xf32>
    %27 = vector.shape_cast %26 : vector<1x1x128xf32> to vector<1x128xf32>
    %28 = vector.broadcast %27 : vector<1x128xf32> to vector<128x128xf32>
    %29 = arith.addf %25, %28 : vector<128x128xf32>
    %cst_22 = arith.constant 0.000000e+00 : f32
    %30 = vector.broadcast %cst_22 : f32 to vector<128x128xf32>
    %31 = arith.maximumf %29, %30 : vector<128x128xf32>
    %32 = arith.truncf %31 : vector<128x128xf32> to vector<128x128xbf16>
    %c1_23 = arith.constant 1 : index
    %c0_24 = arith.constant 0 : index
    %c0_25 = arith.constant 0 : index
    %33 = vector.load %arg4[%c1_23, %c0_24, %c0_25] : memref<2x128x128xbf16, #tpu.memory_space<vmem>>, vector<1x128x128xbf16>
    %34 = vector.shape_cast %33 : vector<1x128x128xbf16> to vector<128x128xbf16>
    %cst_26 = arith.constant dense<0.000000e+00> : vector<128x128xf32>
    %35 = tpu.matmul %32, %34, %cst_26 {dimension_numbers = #tpu.dot_dimension_numbers<[1], [0], [0], [1], [0, 0, 1, 1], [], []>} : vector<128x128xbf16>, vector<128x128xbf16>, vector<128x128xf32> -> vector<128x128xf32>
    %c1_27 = arith.constant 1 : index
    %c0_28 = arith.constant 0 : index
    %c0_29 = arith.constant 0 : index
    %36 = vector.load %arg5[%c1_27, %c0_28, %c0_29] : memref<2x1x128xf32, #tpu.memory_space<vmem>>, vector<1x1x128xf32>
    %37 = vector.shape_cast %36 : vector<1x1x128xf32> to vector<1x128xf32>
    %38 = vector.broadcast %37 : vector<1x128xf32> to vector<128x128xf32>
    %39 = arith.addf %35, %38 : vector<128x128xf32>
    %40 = arith.addf %39, %21 : vector<128x128xf32>
    %cst_30 = arith.constant 0.000000e+00 : f32
    %41 = vector.broadcast %cst_30 : f32 to vector<128x128xf32>
    %42 = arith.maximumf %40, %41 : vector<128x128xf32>
    %c0_31 = arith.constant 0 : index
    %c0_32 = arith.constant 0 : index
    %43 = vector.load %arg6[%c0_31, %c0_32] : memref<128x128xf32, #tpu.memory_space<vmem>>, vector<128x128xf32>
    tpu.vector_store %arg6[%c0_31, %c0_32], %42 {strides = array<i32>} : memref<128x128xf32, #tpu.memory_space<vmem>>, vector<128x128xf32>,
    return
  }
  func.func @transform_0(%arg0: i32) -> (i32, i32) {
    %c0_i32 = arith.constant 0 : i32
    %c0_i32_0 = arith.constant 0 : i32
    return %arg0, %c0_i32 : i32, i32
  }
  func.func @transform_1(%arg0: i32) -> (i32, i32, i32) {
    %c0_i32 = arith.constant 0 : i32
    %c0_i32_0 = arith.constant 0 : i32
    %c0_i32_1 = arith.constant 0 : i32
    %c0_i32_2 = arith.constant 0 : i32
    return %c0_i32, %c0_i32_0, %c0_i32_1 : i32, i32, i32
  }
  func.func @transform_2(%arg0: i32) -> (i32, i32, i32) {
    %c0_i32 = arith.constant 0 : i32
    %c0_i32_0 = arith.constant 0 : i32
    %c0_i32_1 = arith.constant 0 : i32
    %c0_i32_2 = arith.constant 0 : i32
    return %c0_i32, %c0_i32_0, %c0_i32_1 : i32, i32, i32
  }
  func.func @transform_3(%arg0: i32) -> (i32, i32, i32) {
    %c0_i32 = arith.constant 0 : i32
    %c0_i32_0 = arith.constant 0 : i32
    %c0_i32_1 = arith.constant 0 : i32
    %c0_i32_2 = arith.constant 0 : i32
    return %c0_i32, %c0_i32_0, %c0_i32_1 : i32, i32, i32
  }
  func.func @transform_4(%arg0: i32) -> (i32, i32, i32) {
    %c0_i32 = arith.constant 0 : i32
    %c0_i32_0 = arith.constant 0 : i32
    %c0_i32_1 = arith.constant 0 : i32
    %c0_i32_2 = arith.constant 0 : i32
    return %c0_i32, %c0_i32_0, %c0_i32_1 : i32, i32, i32
  }
  func.func @transform_5(%arg0: i32) -> (i32, i32) {
    %c0_i32 = arith.constant 0 : i32
    %c0_i32_0 = arith.constant 0 : i32
    return %arg0, %c0_i32 : i32, i32
  }
}

</mosaic_0001>

<llo_original>
// kernel: tpu_custom_call.1
$region0: #{tpu_custom_call.1}
  #allocation0 [shape = 'u32[]', space=smem, size = 0x4, offset = 0x4, fixed_abs, tag = 'smem constant byte address 0x4 - core index']
  #allocation1 [shape = 'u32[144,128]{1,0:T(1,128)}', space=vmem, size = 0x12000, scoped, tag = 'internal scratch']
  %s0 = inlined_call_operand.hbm [shape: f32[128,128], index: 0, kind: input, shape index: {}]
  %s1 = inlined_call_operand.hbm [shape: bf16[2,128,128], index: 1, kind: input, shape index: {}]
  %s2 = inlined_call_operand.vmem [shape: f32[2,1,128], index: 2, kind: input, shape index: {}]
  %s3 = inlined_call_operand.hbm [shape: bf16[2,128,128], index: 3, kind: input, shape index: {}]
  %s4 = inlined_call_operand.vmem [shape: f32[2,1,128], index: 4, kind: input, shape index: {}]
  %s5 = inlined_call_operand.hbm [shape: f32[128,128], index: 5, kind: output, shape index: {}]
  %s6 = sld [smem:[#allocation0]]
  $region42: #{tpu_custom_call.1} parent=0
    _
  %s8 = ssub.s32 1, %s6
  %s9 = scalar_select 0, %s8, %s6
  $region1: #{tpu_custom_call.1} parent=0
    #allocation2 [shape = 'u8[65536]{0}', space=vmem, size = 0x10000, scoped, tag = 'input window, operand 0, single buffered']
    #allocation3 [shape = 's32[1]{0}', space=sflag, size = 0x4, scoped, tag = 'scoped memory for tpu_custom_call.1']
    #allocation4 [shape = 's32[1]{0}', space=sflag, size = 0x4, scoped, tag = 'scoped memory for tpu_custom_call.1']
    #allocation5 [shape = 'u8[65536]{0}', space=vmem, size = 0x10000, scoped, tag = 'input window, operand 1, single buffered']
    #allocation6 [shape = 's32[1]{0}', space=sflag, size = 0x4, scoped, tag = 'scoped memory for tpu_custom_call.1']
    #allocation7 [shape = 'u8[65536]{0}', space=vmem, size = 0x10000, scoped, tag = 'input window, operand 3, single buffered']
    #allocation8 [shape = 'u8[65536]{0}', space=vmem, size = 0x10000, scoped, tag = 'output window, operand 0, single buffered']
    %10 = vsyncpa [#allocation3], 0
    %11 = vsyncpa [#allocation6], 0
    %12 = vsyncpa [#allocation4], 0
    // Predicated region
    $region2: #{tpu_custom_call.1} parent=1 // pred_check
      _
    $region3: #{tpu_custom_call.1} parent=1 // pred_check_branch
      %14 = sbr.rel (0) target = $region5
    $region4: #{tpu_custom_call.1} parent=1 // pred_region
      %s16 = ssub.s32 2048, 2048
      %17 = vsyncadd [#allocation3], %s16
      %s18 = sshll.u32 [#allocation2], 4
      %s19 = int_to_ptr.vmem [resolvable:$true] %s18
      %24 = dma.hbm_to_vmem [thread:$0]  %s0, 2048, %s19, [#allocation3], 128, 128, 8
    $region5: #{tpu_custom_call.1} parent=1 // pred_fallthru
      _
    // Predicated region
    $region6: #{tpu_custom_call.1} parent=1 // pred_check
      _
    $region7: #{tpu_custom_call.1} parent=1 // pred_check_branch
      %26 = sbr.rel (0) target = $region9
    $region8: #{tpu_custom_call.1} parent=1 // pred_region
      %s28 = ssub.s32 2048, 2048
      %29 = vsyncadd [#allocation6], %s28
      %s30 = sshll.u32 [#allocation5], 4
      %s31 = int_to_ptr.vmem [resolvable:$true] %s30
      %36 = dma.hbm_to_vmem [thread:$0]  %s1, 2048, %s31, [#allocation6], 64, 64, 4
    $region9: #{tpu_custom_call.1} parent=1 // pred_fallthru
      _
    // Predicated region
    $region10: #{tpu_custom_call.1} parent=1 // pred_check
      _
    $region11: #{tpu_custom_call.1} parent=1 // pred_check_branch
      %38 = sbr.rel (0) target = $region13
    $region12: #{tpu_custom_call.1} parent=1 // pred_region
      _
    $region13: #{tpu_custom_call.1} parent=1 // pred_fallthru
      _
    // Predicated region
    $region14: #{tpu_custom_call.1} parent=1 // pred_check
      _
    $region15: #{tpu_custom_call.1} parent=1 // pred_check_branch
      %40 = sbr.rel (0) target = $region17
    $region16: #{tpu_custom_call.1} parent=1 // pred_region
      %s42 = ssub.s32 2048, 2048
      %43 = vsyncadd [#allocation6], %s42
      %s44 = sshll.u32 [#allocation7], 4
      %s45 = int_to_ptr.vmem [resolvable:$true] %s44
      %50 = dma.hbm_to_vmem [thread:$0]  %s3, 2048, %s45, [#allocation6], 64, 64, 4
    $region17: #{tpu_custom_call.1} parent=1 // pred_fallthru
      _
    // Predicated region
    $region18: #{tpu_custom_call.1} parent=1 // pred_check
      _
    $region19: #{tpu_custom_call.1} parent=1 // pred_check_branch
      %52 = sbr.rel (0) target = $region21
    $region20: #{tpu_custom_call.1} parent=1 // pred_region
      _
    $region21: #{tpu_custom_call.1} parent=1 // pred_fallthru
      _
    // Predicated region
    $region22: #{tpu_custom_call.1} parent=1 // pred_check
      _
    $region23: #{tpu_custom_call.1} parent=1 // pred_check_branch
      %54 = sbr.rel (0) target = $region25
    $region24: #{tpu_custom_call.1} parent=1 // pred_region
      %55 = dma.done [#allocation3], 2048
    $region25: #{tpu_custom_call.1} parent=1 // pred_fallthru
      _
    // Predicated region
    $region26: #{tpu_custom_call.1} parent=1 // pred_check
      _
    $region27: #{tpu_custom_call.1} parent=1 // pred_check_branch
      %57 = sbr.rel (0) target = $region29
    $region28: #{tpu_custom_call.1} parent=1 // pred_region
      %58 = dma.done [#allocation6], 2048
    $region29: #{tpu_custom_call.1} parent=1 // pred_fallthru
      _
    // Predicated region
    $region30: #{tpu_custom_call.1} parent=1 // pred_check
      _
    $region31: #{tpu_custom_call.1} parent=1 // pred_check_branch
      %60 = sbr.rel (0) target = $region33
    $region32: #{tpu_custom_call.1} parent=1 // pred_region
      %61 = dma.done [#allocation6], 2048
    $region33: #{tpu_custom_call.1} parent=1 // pred_fallthru
      _
    %v63 = vld [vmem:[#allocation2] sm:$0xff]
    %v64 = vld [vmem:[#allocation2 + $0x8] sm:$0xff]
    %v65 = vld [vmem:[#allocation2 + $0x10] sm:$0xff]
    %v66 = vld [vmem:[#allocation2 + $0x18] sm:$0xff]
    %v67 = vld [vmem:[#allocation2 + $0x20] sm:$0xff]
    %v68 = vld [vmem:[#allocation2 + $0x28] sm:$0xff]
    %v69 = vld [vmem:[#allocation2 + $0x30] sm:$0xff]
    %v70 = vld [vmem:[#allocation2 + $0x38] sm:$0xff]
    %v71 = vld [vmem:[#allocation2 + $0x40] sm:$0xff]
    %v72 = vld [vmem:[#allocation2 + $0x48] sm:$0xff]
    %v73 = vld [vmem:[#allocation2 + $0x50] sm:$0xff]
    %v74 = vld [vmem:[#allocation2 + $0x58] sm:$0xff]
    %v75 = vld [vmem:[#allocation2 + $0x60] sm:$0xff]
    %v76 = vld [vmem:[#allocation2 + $0x68] sm:$0xff]
    %v77 = vld [vmem:[#allocation2 + $0x70] sm:$0xff]
    %v78 = vld [vmem:[#allocation2 + $0x78] sm:$0xff]
    %v79 = vpack.c.bf16 %v64, %v63
    %v80 = vpack.c.bf16 %v66, %v65
    %v81 = vpack.c.bf16 %v68, %v67
    %v82 = vpack.c.bf16 %v70, %v69
    %v83 = vpack.c.bf16 %v72, %v71
    %v84 = vpack.c.bf16 %v74, %v73
    %v85 = vpack.c.bf16 %v76, %v75
    %v86 = vpack.c.bf16 %v78, %v77
    %v87 = vld [vmem:[#allocation5] sm:$0xf]
    %v88 = vld [vmem:[#allocation5 + $0x4] sm:$0xf]
    %v89 = vld [vmem:[#allocation5 + $0x8] sm:$0xf]
    %v90 = vld [vmem:[#allocation5 + $0xc] sm:$0xf]
    %v91 = vld [vmem:[#allocation5 + $0x10] sm:$0xf]
    %v92 = vld [vmem:[#allocation5 + $0x14] sm:$0xf]
    %v93 = vld [vmem:[#allocation5 + $0x18] sm:$0xf]
    %v94 = vld [vmem:[#allocation5 + $0x1c] sm:$0xf]
    %v95 = vld [vmem:[#allocation5 + $0x20] sm:$0xf]
    %v96 = vld [vmem:[#allocation5 + $0x24] sm:$0xf]
    %v97 = vld [vmem:[#allocation5 + $0x28] sm:$0xf]
    %v98 = vld [vmem:[#allocation5 + $0x2c] sm:$0xf]
    %v99 = vld [vmem:[#allocation5 + $0x30] sm:$0xf]
    %v100 = vld [vmem:[#allocation5 + $0x34] sm:$0xf]
    %v101 = vld [vmem:[#allocation5 + $0x38] sm:$0xf]
    %v102 = vld [vmem:[#allocation5 + $0x3c] sm:$0xf]
    %v103 = vld [vmem:[%s2] sm:$0x1]
    %v105 = vlaneseq
    %v106 = vshrl.u32 %v105, 7
    %v107 = vsub.s32 0, %v106
    %v108 = vrot.slane %v103, %v107
    %v126 = vunpack.c.l.b16 %v87
    %v127 = vunpack.c.l.b16 %v88
    %v128 = vunpack.c.l.b16 %v89
    %v129 = vunpack.c.l.b16 %v90
    %v130 = vunpack.c.l.b16 %v91
    %v131 = vunpack.c.l.b16 %v92
    %v132 = vunpack.c.l.b16 %v93
    %v133 = vunpack.c.l.b16 %v94
    %v134 = vunpack.c.l.b16 %v95
    %v135 = vunpack.c.l.b16 %v96
    %v136 = vunpack.c.l.b16 %v97
    %v137 = vunpack.c.l.b16 %v98
    %v138 = vunpack.c.l.b16 %v99
    %v139 = vunpack.c.l.b16 %v100
    %v140 = vunpack.c.l.b16 %v101
    %v141 = vunpack.c.l.b16 %v102
    %v142 = vpack.c.b16 %v127, %v126
    %v143 = vpack.c.b16 %v129, %v128
    %v144 = vpack.c.b16 %v131, %v130
    %v145 = vpack.c.b16 %v133, %v132
    %v146 = vpack.c.b16 %v135, %v134
    %v147 = vpack.c.b16 %v137, %v136
    %v148 = vpack.c.b16 %v139, %v138
    %v149 = vpack.c.b16 %v141, %v140
    %158 = vmatprep.subr.bf16.mxu0 0
    %159 = vmatpush1.bf16.msra.mxu0 %v142
    %160 = vmatprep.subr.bf16.mxu0 0
    %161 = vmatpush1.bf16.msra.mxu0 %v143
    %162 = vmatprep.subr.bf16.mxu0 0
    %163 = vmatpush1.bf16.msra.mxu0 %v144
    %164 = vmatprep.subr.bf16.mxu0 0
    %165 = vmatpush1.bf16.msra.mxu0 %v145
    %166 = vmatprep.subr.bf16.mxu0 0
    %167 = vmatpush1.bf16.msra.mxu0 %v146
    %168 = vmatprep.subr.bf16.mxu0 0
    %169 = vmatpush1.bf16.msra.mxu0 %v147
    %170 = vmatprep.subr.bf16.mxu0 0
    %171 = vmatpush1.bf16.msra.mxu0 %v148
    %172 = vmatprep.subr.bf16.mxu0 0
    %173 = vmatpush1.bf16.msra.mxu0 %v149
    %174 = vmatprep.subr.bf16.mxu0 0
    %175 = vmatpush1.bf16.msra.mxu0 0
    %176 = vmatprep.subr.bf16.mxu0 0
    %177 = vmatpush1.bf16.msra.mxu0 0
    %178 = vmatprep.subr.bf16.mxu0 0
    %179 = vmatpush1.bf16.msra.mxu0 0
    %180 = vmatprep.subr.bf16.mxu0 0
    %181 = vmatpush1.bf16.msra.mxu0 0
    %182 = vmatprep.subr.bf16.mxu0 0
    %183 = vmatpush1.bf16.msra.mxu0 0
    %184 = vmatprep.subr.bf16.mxu0 0
    %185 = vmatpush1.bf16.msra.mxu0 0
    %186 = vmatprep.subr.bf16.mxu0 0
    %187 = vmatpush1.bf16.msra.mxu0 0
    %188 = vmatprep.subr.bf16.mxu0 0
    %189 = vmatpush1.bf16.msra.mxu0 0
    %190 = vmatprep.mubr.bf16.mxu0 0
    %191 = vmatmul.mubr.bf16.gmra.mrb[0].mxu0 %v79
    %v192 = vpop.f32.mrb[0].mxu0
    %v193 = vadd.f32 %v108, %v192
    %v194 = vpop.f32.mrb[0].mxu0
    %v195 = vpop.f32.mrb[0].mxu0
    %v196 = vadd.f32 %v108, %v195
    %v197 = vpop.f32.mrb[0].mxu0
    %198 = vmatprep.mubr.bf16.mxu0 0
    %199 = vmatmul.mubr.bf16.gmra.mrb[0].mxu0 %v80
    %v200 = vpop.f32.mrb[0].mxu0
    %v201 = vadd.f32 %v108, %v200
    %v202 = vpop.f32.mrb[0].mxu0
    %v203 = vpop.f32.mrb[0].mxu0
    %v204 = vadd.f32 %v108, %v203
    %v205 = vpop.f32.mrb[0].mxu0
    %206 = vmatprep.mubr.bf16.mxu0 0
    %207 = vmatmul.mubr.bf16.gmra.mrb[0].mxu0 %v81
    %v208 = vpop.f32.mrb[0].mxu0
    %v209 = vadd.f32 %v108, %v208
    %v210 = vpop.f32.mrb[0].mxu0
    %v211 = vpop.f32.mrb[0].mxu0
    %v212 = vadd.f32 %v108, %v211
    %v213 = vpop.f32.mrb[0].mxu0
    %214 = vmatprep.mubr.bf16.mxu0 0
    %215 = vmatmul.mubr.bf16.gmra.mrb[0].mxu0 %v82
    %v216 = vpop.f32.mrb[0].mxu0
    %v217 = vadd.f32 %v108, %v216
    %v218 = vpop.f32.mrb[0].mxu0
    %v219 = vpop.f32.mrb[0].mxu0
    %v220 = vadd.f32 %v108, %v219
    %v221 = vpop.f32.mrb[0].mxu0
    %222 = vmatprep.mubr.bf16.mxu0 0
    %223 = vmatmul.mubr.bf16.gmra.mrb[0].mxu0 %v83
    %v224 = vpop.f32.mrb[0].mxu0
    %v225 = vadd.f32 %v108, %v224
    %v226 = vpop.f32.mrb[0].mxu0
    %v227 = vpop.f32.mrb[0].mxu0
    %v228 = vadd.f32 %v108, %v227
    %v229 = vpop.f32.mrb[0].mxu0
    %230 = vmatprep.mubr.bf16.mxu0 0
    %231 = vmatmul.mubr.bf16.gmra.mrb[0].mxu0 %v84
    %v232 = vpop.f32.mrb[0].mxu0
    %v233 = vadd.f32 %v108, %v232
    %v234 = vpop.f32.mrb[0].mxu0
    %v235 = vpop.f32.mrb[0].mxu0
    %v236 = vadd.f32 %v108, %v235
    %v237 = vpop.f32.mrb[0].mxu0
    %238 = vmatprep.mubr.bf16.mxu0 0
    %239 = vmatmul.mubr.bf16.gmra.mrb[0].mxu0 %v85
    %v240 = vpop.f32.mrb[0].mxu0
    %v241 = vadd.f32 %v108, %v240
    %v242 = vpop.f32.mrb[0].mxu0
    %v243 = vpop.f32.mrb[0].mxu0
    %v244 = vadd.f32 %v108, %v243
    %v245 = vpop.f32.mrb[0].mxu0
    %246 = vmatprep.mubr.bf16.mxu0 0
    %247 = vmatmul.mubr.bf16.gmra.mrb[0].mxu0 %v86
    %v248 = vpop.f32.mrb[0].mxu0
    %v249 = vadd.f32 %v108, %v248
    %v250 = vpop.f32.mrb[0].mxu0
    %v251 = vpop.f32.mrb[0].mxu0
    %v252 = vadd.f32 %v108, %v251
    %v253 = vpop.f32.mrb[0].mxu0
    %254 = vdwg.mxu0
    %v255 = vmax.f32 %v193, 0.0
    %v256 = vmax.f32 %v196, 0.0
    %v257 = vmax.f32 %v201, 0.0
    %v258 = vmax.f32 %v204, 0.0
    %v259 = vmax.f32 %v209, 0.0
    %v260 = vmax.f32 %v212, 0.0
    %v261 = vmax.f32 %v217, 0.0
    %v262 = vmax.f32 %v220, 0.0
    %v263 = vmax.f32 %v225, 0.0
    %v264 = vmax.f32 %v228, 0.0
    %v265 = vmax.f32 %v233, 0.0
    %v266 = vmax.f32 %v236, 0.0
    %v267 = vmax.f32 %v241, 0.0
    %v268 = vmax.f32 %v244, 0.0
    %v269 = vmax.f32 %v249, 0.0
    %v270 = vmax.f32 %v252, 0.0
    %v271 = vpack.c.bf16 %v256, %v255
    %v272 = vpack.c.bf16 %v258, %v257
    %v273 = vpack.c.bf16 %v260, %v259
    %v274 = vpack.c.bf16 %v262, %v261
    %v275 = vpack.c.bf16 %v264, %v263
    %v276 = vpack.c.bf16 %v266, %v265
    %v277 = vpack.c.bf16 %v268, %v267
    %v278 = vpack.c.bf16 %v270, %v269
    %v279 = vld [vmem:[#allocation7] sm:$0xf]
    %v280 = vld [vmem:[#allocation7 + $0x4] sm:$0xf]
    %v281 = vld [vmem:[#allocation7 + $0x8] sm:$0xf]
    %v282 = vld [vmem:[#allocation7 + $0xc] sm:$0xf]
    %v283 = vld [vmem:[#allocation7 + $0x10] sm:$0xf]
    %v284 = vld [vmem:[#allocation7 + $0x14] sm:$0xf]
    %v285 = vld [vmem:[#allocation7 + $0x18] sm:$0xf]
    %v286 = vld [vmem:[#allocation7 + $0x1c] sm:$0xf]
    %v287 = vld [vmem:[#allocation7 + $0x20] sm:$0xf]
    %v288 = vld [vmem:[#allocation7 + $0x24] sm:$0xf]
    %v289 = vld [vmem:[#allocation7 + $0x28] sm:$0xf]
    %v290 = vld [vmem:[#allocation7 + $0x2c] sm:$0xf]
    %v291 = vld [vmem:[#allocation7 + $0x30] sm:$0xf]
    %v292 = vld [vmem:[#allocation7 + $0x34] sm:$0xf]
    %v293 = vld [vmem:[#allocation7 + $0x38] sm:$0xf]
    %v294 = vld [vmem:[#allocation7 + $0x3c] sm:$0xf]
    %v295 = vld [vmem:[%s4] sm:$0x1]
    %v297 = vlaneseq
    %v298 = vshrl.u32 %v297, 7
    %v299 = vsub.s32 0, %v298
    %v300 = vrot.slane %v295, %v299
    %v318 = vunpack.c.l.b16 %v279
    %v319 = vunpack.c.l.b16 %v280
    %v320 = vunpack.c.l.b16 %v281
    %v321 = vunpack.c.l.b16 %v282
    %v322 = vunpack.c.l.b16 %v283
    %v323 = vunpack.c.l.b16 %v284
    %v324 = vunpack.c.l.b16 %v285
    %v325 = vunpack.c.l.b16 %v286
    %v326 = vunpack.c.l.b16 %v287
    %v327 = vunpack.c.l.b16 %v288
    %v328 = vunpack.c.l.b16 %v289
    %v329 = vunpack.c.l.b16 %v290
    %v330 = vunpack.c.l.b16 %v291
    %v331 = vunpack.c.l.b16 %v292
    %v332 = vunpack.c.l.b16 %v293
    %v333 = vunpack.c.l.b16 %v294
    %v334 = vpack.c.b16 %v319, %v318
    %v335 = vpack.c.b16 %v321, %v320
    %v336 = vpack.c.b16 %v323, %v322
    %v337 = vpack.c.b16 %v325, %v324
    %v338 = vpack.c.b16 %v327, %v326
    %v339 = vpack.c.b16 %v329, %v328
    %v340 = vpack.c.b16 %v331, %v330
    %v341 = vpack.c.b16 %v333, %v332
    %350 = vmatprep.subr.bf16.mxu0 0
    %351 = vmatpush1.bf16.msra.mxu0 %v334
    %352 = vmatprep.subr.bf16.mxu0 0
    %353 = vmatpush1.bf16.msra.mxu0 %v335
    %354 = vmatprep.subr.bf16.mxu0 0
    %355 = vmatpush1.bf16.msra.mxu0 %v336
    %356 = vmatprep.subr.bf16.mxu0 0
    %357 = vmatpush1.bf16.msra.mxu0 %v337
    %358 = vmatprep.subr.bf16.mxu0 0
    %359 = vmatpush1.bf16.msra.mxu0 %v338
    %360 = vmatprep.subr.bf16.mxu0 0
    %361 = vmatpush1.bf16.msra.mxu0 %v339
    %362 = vmatprep.subr.bf16.mxu0 0
    %363 = vmatpush1.bf16.msra.mxu0 %v340
    %364 = vmatprep.subr.bf16.mxu0 0
    %365 = vmatpush1.bf16.msra.mxu0 %v341
    %366 = vmatprep.subr.bf16.mxu0 0
    %367 = vmatpush1.bf16.msra.mxu0 0
    %368 = vmatprep.subr.bf16.mxu0 0
    %369 = vmatpush1.bf16.msra.mxu0 0
    %370 = vmatprep.subr.bf16.mxu0 0
    %371 = vmatpush1.bf16.msra.mxu0 0
    %372 = vmatprep.subr.bf16.mxu0 0
    %373 = vmatpush1.bf16.msra.mxu0 0
    %374 = vmatprep.subr.bf16.mxu0 0
    %375 = vmatpush1.bf16.msra.mxu0 0
    %376 = vmatprep.subr.bf16.mxu0 0
    %377 = vmatpush1.bf16.msra.mxu0 0
    %378 = vmatprep.subr.bf16.mxu0 0
    %379 = vmatpush1.bf16.msra.mxu0 0
    %380 = vmatprep.subr.bf16.mxu0 0
    %381 = vmatpush1.bf16.msra.mxu0 0
    %382 = vmatprep.mubr.bf16.mxu0 0
    %383 = vmatmul.mubr.bf16.gmra.mrb[0].mxu0 %v271
    %v384 = vpop.f32.mrb[0].mxu0
    %v385 = vadd.f32 %v300, %v384
    %v386 = vpop.f32.mrb[0].mxu0
    %v387 = vpop.f32.mrb[0].mxu0
    %v388 = vadd.f32 %v300, %v387
    %v389 = vpop.f32.mrb[0].mxu0
    %390 = vmatprep.mubr.bf16.mxu0 0
    %391 = vmatmul.mubr.bf16.gmra.mrb[0].mxu0 %v272
    %v392 = vpop.f32.mrb[0].mxu0
    %v393 = vadd.f32 %v300, %v392
    %v394 = vpop.f32.mrb[0].mxu0
    %v395 = vpop.f32.mrb[0].mxu0
    %v396 = vadd.f32 %v300, %v395
    %v397 = vpop.f32.mrb[0].mxu0
    %398 = vmatprep.mubr.bf16.mxu0 0
    %399 = vmatmul.mubr.bf16.gmra.mrb[0].mxu0 %v273
    %v400 = vpop.f32.mrb[0].mxu0
    %v401 = vadd.f32 %v300, %v400
    %v402 = vpop.f32.mrb[0].mxu0
    %v403 = vpop.f32.mrb[0].mxu0
    %v404 = vadd.f32 %v300, %v403
    %v405 = vpop.f32.mrb[0].mxu0
    %406 = vmatprep.mubr.bf16.mxu0 0
    %407 = vmatmul.mubr.bf16.gmra.mrb[0].mxu0 %v274
    %v408 = vpop.f32.mrb[0].mxu0
    %v409 = vadd.f32 %v300, %v408
    %v410 = vpop.f32.mrb[0].mxu0
    %v411 = vpop.f32.mrb[0].mxu0
    %v412 = vadd.f32 %v300, %v411
    %v413 = vpop.f32.mrb[0].mxu0
    %414 = vmatprep.mubr.bf16.mxu0 0
    %415 = vmatmul.mubr.bf16.gmra.mrb[0].mxu0 %v275
    %v416 = vpop.f32.mrb[0].mxu0
    %v417 = vadd.f32 %v300, %v416
    %v418 = vpop.f32.mrb[0].mxu0
    %v419 = vpop.f32.mrb[0].mxu0
    %v420 = vadd.f32 %v300, %v419
    %v421 = vpop.f32.mrb[0].mxu0
    %422 = vmatprep.mubr.bf16.mxu0 0
    %423 = vmatmul.mubr.bf16.gmra.mrb[0].mxu0 %v276
    %v424 = vpop.f32.mrb[0].mxu0
    %v425 = vadd.f32 %v300, %v424
    %v426 = vpop.f32.mrb[0].mxu0
    %v427 = vpop.f32.mrb[0].mxu0
    %v428 = vadd.f32 %v300, %v427
    %v429 = vpop.f32.mrb[0].mxu0
    %430 = vmatprep.mubr.bf16.mxu0 0
    %431 = vmatmul.mubr.bf16.gmra.mrb[0].mxu0 %v277
    %v432 = vpop.f32.mrb[0].mxu0
    %v433 = vadd.f32 %v300, %v432
    %v434 = vpop.f32.mrb[0].mxu0
    %v435 = vpop.f32.mrb[0].mxu0
    %v436 = vadd.f32 %v300, %v435
    %v437 = vpop.f32.mrb[0].mxu0
    %438 = vmatprep.mubr.bf16.mxu0 0
    %439 = vmatmul.mubr.bf16.gmra.mrb[0].mxu0 %v278
    %v440 = vpop.f32.mrb[0].mxu0
    %v441 = vadd.f32 %v300, %v440
    %v442 = vpop.f32.mrb[0].mxu0
    %v443 = vpop.f32.mrb[0].mxu0
    %v444 = vadd.f32 %v300, %v443
    %v445 = vpop.f32.mrb[0].mxu0
    %446 = vdwg.mxu0
    %v447 = vadd.f32 %v385, %v63
    %v448 = vadd.f32 %v388, %v64
    %v449 = vadd.f32 %v393, %v65
    %v450 = vadd.f32 %v396, %v66
    %v451 = vadd.f32 %v401, %v67
    %v452 = vadd.f32 %v404, %v68
    %v453 = vadd.f32 %v409, %v69
    %v454 = vadd.f32 %v412, %v70
    %v455 = vadd.f32 %v417, %v71
    %v456 = vadd.f32 %v420, %v72
    %v457 = vadd.f32 %v425, %v73
    %v458 = vadd.f32 %v428, %v74
    %v459 = vadd.f32 %v433, %v75
    %v460 = vadd.f32 %v436, %v76
    %v461 = vadd.f32 %v441, %v77
    %v462 = vadd.f32 %v444, %v78
    %v463 = vmax.f32 %v447, 0.0
    %v464 = vmax.f32 %v448, 0.0
    %v465 = vmax.f32 %v449, 0.0
    %v466 = vmax.f32 %v450, 0.0
    %v467 = vmax.f32 %v451, 0.0
    %v468 = vmax.f32 %v452, 0.0
    %v469 = vmax.f32 %v453, 0.0
    %v470 = vmax.f32 %v454, 0.0
    %v471 = vmax.f32 %v455, 0.0
    %v472 = vmax.f32 %v456, 0.0
    %v473 = vmax.f32 %v457, 0.0
    %v474 = vmax.f32 %v458, 0.0
    %v475 = vmax.f32 %v459, 0.0
    %v476 = vmax.f32 %v460, 0.0
    %v477 = vmax.f32 %v461, 0.0
    %v478 = vmax.f32 %v462, 0.0
    %v479 = vpack.c.bf16 %v464, %v463
    %v480 = vpack.c.bf16 %v466, %v465
    %v481 = vpack.c.bf16 %v468, %v467
    %v482 = vpack.c.bf16 %v470, %v469
    %v483 = vpack.c.bf16 %v472, %v471
    %v484 = vpack.c.bf16 %v474, %v473
    %v485 = vpack.c.bf16 %v476, %v475
    %v486 = vpack.c.bf16 %v478, %v477
    %s487 = scalar_lea.vmem [#allocation5], 64
    %v488 = vld [vmem:[%s487] sm:$0xf]
    %v489 = vld [vmem:[%s487 + $0x4] sm:$0xf]
    %v490 = vld [vmem:[%s487 + $0x8] sm:$0xf]
    %v491 = vld [vmem:[%s487 + $0xc] sm:$0xf]
    %v492 = vld [vmem:[%s487 + $0x10] sm:$0xf]
    %v493 = vld [vmem:[%s487 + $0x14] sm:$0xf]
    %v494 = vld [vmem:[%s487 + $0x18] sm:$0xf]
    %v495 = vld [vmem:[%s487 + $0x1c] sm:$0xf]
    %v496 = vld [vmem:[%s487 + $0x20] sm:$0xf]
    %v497 = vld [vmem:[%s487 + $0x24] sm:$0xf]
    %v498 = vld [vmem:[%s487 + $0x28] sm:$0xf]
    %v499 = vld [vmem:[%s487 + $0x2c] sm:$0xf]
    %v500 = vld [vmem:[%s487 + $0x30] sm:$0xf]
    %v501 = vld [vmem:[%s487 + $0x34] sm:$0xf]
    %v502 = vld [vmem:[%s487 + $0x38] sm:$0xf]
    %v503 = vld [vmem:[%s487 + $0x3c] sm:$0xf]
    %s504 = scalar_lea.vmem %s2, 1
    %v505 = vld [vmem:[%s504] sm:$0x1]
    %v507 = vlaneseq
    %v508 = vshrl.u32 %v507, 7
    %v509 = vsub.s32 0, %v508
    %v510 = vrot.slane %v505, %v509
    %v528 = vunpack.c.l.b16 %v488
    %v529 = vunpack.c.l.b16 %v489
    %v530 = vunpack.c.l.b16 %v490
    %v531 = vunpack.c.l.b16 %v491
    %v532 = vunpack.c.l.b16 %v492
    %v533 = vunpack.c.l.b16 %v493
    %v534 = vunpack.c.l.b16 %v494
    %v535 = vunpack.c.l.b16 %v495
    %v536 = vunpack.c.l.b16 %v496
    %v537 = vunpack.c.l.b16 %v497
    %v538 = vunpack.c.l.b16 %v498
    %v539 = vunpack.c.l.b16 %v499
    %v540 = vunpack.c.l.b16 %v500
    %v541 = vunpack.c.l.b16 %v501
    %v542 = vunpack.c.l.b16 %v502
    %v543 = vunpack.c.l.b16 %v503
    %v544 = vpack.c.b16 %v529, %v528
    %v545 = vpack.c.b16 %v531, %v530
    %v546 = vpack.c.b16 %v533, %v532
    %v547 = vpack.c.b16 %v535, %v534
    %v548 = vpack.c.b16 %v537, %v536
    %v549 = vpack.c.b16 %v539, %v538
    %v550 = vpack.c.b16 %v541, %v540
    %v551 = vpack.c.b16 %v543, %v542
    %560 = vmatprep.subr.bf16.mxu0 0
    %561 = vmatpush1.bf16.msra.mxu0 %v544
    %562 = vmatprep.subr.bf16.mxu0 0
    %563 = vmatpush1.bf16.msra.mxu0 %v545
    %564 = vmatprep.subr.bf16.mxu0 0
    %565 = vmatpush1.bf16.msra.mxu0 %v546
    %566 = vmatprep.subr.bf16.mxu0 0
    %567 = vmatpush1.bf16.msra.mxu0 %v547
    %568 = vmatprep.subr.bf16.mxu0 0
    %569 = vmatpush1.bf16.msra.mxu0 %v548
    %570 = vmatprep.subr.bf16.mxu0 0
    %571 = vmatpush1.bf16.msra.mxu0 %v549
    %572 = vmatprep.subr.bf16.mxu0 0
    %573 = vmatpush1.bf16.msra.mxu0 %v550
    %574 = vmatprep.subr.bf16.mxu0 0
    %575 = vmatpush1.bf16.msra.mxu0 %v551
    %576 = vmatprep.subr.bf16.mxu0 0
    %577 = vmatpush1.bf16.msra.mxu0 0
    %578 = vmatprep.subr.bf16.mxu0 0
    %579 = vmatpush1.bf16.msra.mxu0 0
    %580 = vmatprep.subr.bf16.mxu0 0
    %581 = vmatpush1.bf16.msra.mxu0 0
    %582 = vmatprep.subr.bf16.mxu0 0
    %583 = vmatpush1.bf16.msra.mxu0 0
    %584 = vmatprep.subr.bf16.mxu0 0
    %585 = vmatpush1.bf16.msra.mxu0 0
    %586 = vmatprep.subr.bf16.mxu0 0
    %587 = vmatpush1.bf16.msra.mxu0 0
    %588 = vmatprep.subr.bf16.mxu0 0
    %589 = vmatpush1.bf16.msra.mxu0 0
    %590 = vmatprep.subr.bf16.mxu0 0
    %591 = vmatpush1.bf16.msra.mxu0 0
    %592 = vmatprep.mubr.bf16.mxu0 0
    %593 = vmatmul.mubr.bf16.gmra.mrb[0].mxu0 %v479
    %v594 = vpop.f32.mrb[0].mxu0
    %v595 = vadd.f32 %v510, %v594
    %v596 = vpop.f32.mrb[0].mxu0
    %v597 = vpop.f32.mrb[0].mxu0
    %v598 = vadd.f32 %v510, %v597
    %v599 = vpop.f32.mrb[0].mxu0
    %600 = vmatprep.mubr.bf16.mxu0 0
    %601 = vmatmul.mubr.bf16.gmra.mrb[0].mxu0 %v480
    %v602 = vpop.f32.mrb[0].mxu0
    %v603 = vadd.f32 %v510, %v602
    %v604 = vpop.f32.mrb[0].mxu0
    %v605 = vpop.f32.mrb[0].mxu0
    %v606 = vadd.f32 %v510, %v605
    %v607 = vpop.f32.mrb[0].mxu0
    %608 = vmatprep.mubr.bf16.mxu0 0
    %609 = vmatmul.mubr.bf16.gmra.mrb[0].mxu0 %v481
    %v610 = vpop.f32.mrb[0].mxu0
    %v611 = vadd.f32 %v510, %v610
    %v612 = vpop.f32.mrb[0].mxu0
    %v613 = vpop.f32.mrb[0].mxu0
    %v614 = vadd.f32 %v510, %v613
    %v615 = vpop.f32.mrb[0].mxu0
    %616 = vmatprep.mubr.bf16.mxu0 0
    %617 = vmatmul.mubr.bf16.gmra.mrb[0].mxu0 %v482
    %v618 = vpop.f32.mrb[0].mxu0
    %v619 = vadd.f32 %v510, %v618
    %v620 = vpop.f32.mrb[0].mxu0
    %v621 = vpop.f32.mrb[0].mxu0
    %v622 = vadd.f32 %v510, %v621
    %v623 = vpop.f32.mrb[0].mxu0
    %624 = vmatprep.mubr.bf16.mxu0 0
    %625 = vmatmul.mubr.bf16.gmra.mrb[0].mxu0 %v483
    %v626 = vpop.f32.mrb[0].mxu0
    %v627 = vadd.f32 %v510, %v626
    %v628 = vpop.f32.mrb[0].mxu0
    %v629 = vpop.f32.mrb[0].mxu0
    %v630 = vadd.f32 %v510, %v629
    %v631 = vpop.f32.mrb[0].mxu0
    %632 = vmatprep.mubr.bf16.mxu0 0
    %633 = vmatmul.mubr.bf16.gmra.mrb[0].mxu0 %v484
    %v634 = vpop.f32.mrb[0].mxu0
    %v635 = vadd.f32 %v510, %v634
    %v636 = vpop.f32.mrb[0].mxu0
    %v637 = vpop.f32.mrb[0].mxu0
    %v638 = vadd.f32 %v510, %v637
    %v639 = vpop.f32.mrb[0].mxu0
    %640 = vmatprep.mubr.bf16.mxu0 0
    %641 = vmatmul.mubr.bf16.gmra.mrb[0].mxu0 %v485
    %v642 = vpop.f32.mrb[0].mxu0
    %v643 = vadd.f32 %v510, %v642
    %v644 = vpop.f32.mrb[0].mxu0
    %v645 = vpop.f32.mrb[0].mxu0
    %v646 = vadd.f32 %v510, %v645
    %v647 = vpop.f32.mrb[0].mxu0
    %648 = vmatprep.mubr.bf16.mxu0 0
    %649 = vmatmul.mubr.bf16.gmra.mrb[0].mxu0 %v486
    %v650 = vpop.f32.mrb[0].mxu0
    %v651 = vadd.f32 %v510, %v650
    %v652 = vpop.f32.mrb[0].mxu0
    %v653 = vpop.f32.mrb[0].mxu0
    %v654 = vadd.f32 %v510, %v653
    %v655 = vpop.f32.mrb[0].mxu0
    %656 = vdwg.mxu0
    %v657 = vmax.f32 %v595, 0.0
    %v658 = vmax.f32 %v598, 0.0
    %v659 = vmax.f32 %v603, 0.0
    %v660 = vmax.f32 %v606, 0.0
    %v661 = vmax.f32 %v611, 0.0
    %v662 = vmax.f32 %v614, 0.0
    %v663 = vmax.f32 %v619, 0.0
    %v664 = vmax.f32 %v622, 0.0
    %v665 = vmax.f32 %v627, 0.0
    %v666 = vmax.f32 %v630, 0.0
    %v667 = vmax.f32 %v635, 0.0
    %v668 = vmax.f32 %v638, 0.0
    %v669 = vmax.f32 %v643, 0.0
    %v670 = vmax.f32 %v646, 0.0
    %v671 = vmax.f32 %v651, 0.0
    %v672 = vmax.f32 %v654, 0.0
    %v673 = vpack.c.bf16 %v658, %v657
    %v674 = vpack.c.bf16 %v660, %v659
    %v675 = vpack.c.bf16 %v662, %v661
    %v676 = vpack.c.bf16 %v664, %v663
    %v677 = vpack.c.bf16 %v666, %v665
    %v678 = vpack.c.bf16 %v668, %v667
    %v679 = vpack.c.bf16 %v670, %v669
    %v680 = vpack.c.bf16 %v672, %v671
    %s681 = scalar_lea.vmem [#allocation7], 64
    %v682 = vld [vmem:[%s681] sm:$0xf]
    %v683 = vld [vmem:[%s681 + $0x4] sm:$0xf]
    %v684 = vld [vmem:[%s681 + $0x8] sm:$0xf]
    %v685 = vld [vmem:[%s681 + $0xc] sm:$0xf]
    %v686 = vld [vmem:[%s681 + $0x10] sm:$0xf]
    %v687 = vld [vmem:[%s681 + $0x14] sm:$0xf]
    %v688 = vld [vmem:[%s681 + $0x18] sm:$0xf]
    %v689 = vld [vmem:[%s681 + $0x1c] sm:$0xf]
    %v690 = vld [vmem:[%s681 + $0x20] sm:$0xf]
    %v691 = vld [vmem:[%s681 + $0x24] sm:$0xf]
    %v692 = vld [vmem:[%s681 + $0x28] sm:$0xf]
    %v693 = vld [vmem:[%s681 + $0x2c] sm:$0xf]
    %v694 = vld [vmem:[%s681 + $0x30] sm:$0xf]
    %v695 = vld [vmem:[%s681 + $0x34] sm:$0xf]
    %v696 = vld [vmem:[%s681 + $0x38] sm:$0xf]
    %v697 = vld [vmem:[%s681 + $0x3c] sm:$0xf]
    %s698 = scalar_lea.vmem %s4, 1
    %v699 = vld [vmem:[%s698] sm:$0x1]
    %v701 = vlaneseq
    %v702 = vshrl.u32 %v701, 7
    %v703 = vsub.s32 0, %v702
    %v704 = vrot.slane %v699, %v703
    %v722 = vunpack.c.l.b16 %v682
    %v723 = vunpack.c.l.b16 %v683
    %v724 = vunpack.c.l.b16 %v684
    %v725 = vunpack.c.l.b16 %v685
    %v726 = vunpack.c.l.b16 %v686
    %v727 = vunpack.c.l.b16 %v687
    %v728 = vunpack.c.l.b16 %v688
    %v729 = vunpack.c.l.b16 %v689
    %v730 = vunpack.c.l.b16 %v690
    %v731 = vunpack.c.l.b16 %v691
    %v732 = vunpack.c.l.b16 %v692
    %v733 = vunpack.c.l.b16 %v693
    %v734 = vunpack.c.l.b16 %v694
    %v735 = vunpack.c.l.b16 %v695
    %v736 = vunpack.c.l.b16 %v696
    %v737 = vunpack.c.l.b16 %v697
    %v738 = vpack.c.b16 %v723, %v722
    %v739 = vpack.c.b16 %v725, %v724
    %v740 = vpack.c.b16 %v727, %v726
    %v741 = vpack.c.b16 %v729, %v728
    %v742 = vpack.c.b16 %v731, %v730
    %v743 = vpack.c.b16 %v733, %v732
    %v744 = vpack.c.b16 %v735, %v734
    %v745 = vpack.c.b16 %v737, %v736
    %754 = vmatprep.subr.bf16.mxu0 0
    %755 = vmatpush1.bf16.msra.mxu0 %v738
    %756 = vmatprep.subr.bf16.mxu0 0
    %757 = vmatpush1.bf16.msra.mxu0 %v739
    %758 = vmatprep.subr.bf16.mxu0 0
    %759 = vmatpush1.bf16.msra.mxu0 %v740
    %760 = vmatprep.subr.bf16.mxu0 0
    %761 = vmatpush1.bf16.msra.mxu0 %v741
    %762 = vmatprep.subr.bf16.mxu0 0
    %763 = vmatpush1.bf16.msra.mxu0 %v742
    %764 = vmatprep.subr.bf16.mxu0 0
    %765 = vmatpush1.bf16.msra.mxu0 %v743
    %766 = vmatprep.subr.bf16.mxu0 0
    %767 = vmatpush1.bf16.msra.mxu0 %v744
    %768 = vmatprep.subr.bf16.mxu0 0
    %769 = vmatpush1.bf16.msra.mxu0 %v745
    %770 = vmatprep.subr.bf16.mxu0 0
    %771 = vmatpush1.bf16.msra.mxu0 0
    %772 = vmatprep.subr.bf16.mxu0 0
    %773 = vmatpush1.bf16.msra.mxu0 0
    %774 = vmatprep.subr.bf16.mxu0 0
    %775 = vmatpush1.bf16.msra.mxu0 0
    %776 = vmatprep.subr.bf16.mxu0 0
    %777 = vmatpush1.bf16.msra.mxu0 0
    %778 = vmatprep.subr.bf16.mxu0 0
    %779 = vmatpush1.bf16.msra.mxu0 0
    %780 = vmatprep.subr.bf16.mxu0 0
    %781 = vmatpush1.bf16.msra.mxu0 0
    %782 = vmatprep.subr.bf16.mxu0 0
    %783 = vmatpush1.bf16.msra.mxu0 0
    %784 = vmatprep.subr.bf16.mxu0 0
    %785 = vmatpush1.bf16.msra.mxu0 0
    %786 = vmatprep.mubr.bf16.mxu0 0
    %787 = vmatmul.mubr.bf16.gmra.mrb[0].mxu0 %v673
    %v788 = vpop.f32.mrb[0].mxu0
    %v789 = vadd.f32 %v704, %v788
    %v790 = vpop.f32.mrb[0].mxu0
    %v791 = vpop.f32.mrb[0].mxu0
    %v792 = vadd.f32 %v704, %v791
    %v793 = vpop.f32.mrb[0].mxu0
    %794 = vmatprep.mubr.bf16.mxu0 0
    %795 = vmatmul.mubr.bf16.gmra.mrb[0].mxu0 %v674
    %v796 = vpop.f32.mrb[0].mxu0
    %v797 = vadd.f32 %v704, %v796
    %v798 = vpop.f32.mrb[0].mxu0
    %v799 = vpop.f32.mrb[0].mxu0
    %v800 = vadd.f32 %v704, %v799
    %v801 = vpop.f32.mrb[0].mxu0
    %802 = vmatprep.mubr.bf16.mxu0 0
    %803 = vmatmul.mubr.bf16.gmra.mrb[0].mxu0 %v675
    %v804 = vpop.f32.mrb[0].mxu0
    %v805 = vadd.f32 %v704, %v804
    %v806 = vpop.f32.mrb[0].mxu0
    %v807 = vpop.f32.mrb[0].mxu0
    %v808 = vadd.f32 %v704, %v807
    %v809 = vpop.f32.mrb[0].mxu0
    %810 = vmatprep.mubr.bf16.mxu0 0
    %811 = vmatmul.mubr.bf16.gmra.mrb[0].mxu0 %v676
    %v812 = vpop.f32.mrb[0].mxu0
    %v813 = vadd.f32 %v704, %v812
    %v814 = vpop.f32.mrb[0].mxu0
    %v815 = vpop.f32.mrb[0].mxu0
    %v816 = vadd.f32 %v704, %v815
    %v817 = vpop.f32.mrb[0].mxu0
    %818 = vmatprep.mubr.bf16.mxu0 0
    %819 = vmatmul.mubr.bf16.gmra.mrb[0].mxu0 %v677
    %v820 = vpop.f32.mrb[0].mxu0
    %v821 = vadd.f32 %v704, %v820
    %v822 = vpop.f32.mrb[0].mxu0
    %v823 = vpop.f32.mrb[0].mxu0
    %v824 = vadd.f32 %v704, %v823
    %v825 = vpop.f32.mrb[0].mxu0
    %826 = vmatprep.mubr.bf16.mxu0 0
    %827 = vmatmul.mubr.bf16.gmra.mrb[0].mxu0 %v678
    %v828 = vpop.f32.mrb[0].mxu0
    %v829 = vadd.f32 %v704, %v828
    %v830 = vpop.f32.mrb[0].mxu0
    %v831 = vpop.f32.mrb[0].mxu0
    %v832 = vadd.f32 %v704, %v831
    %v833 = vpop.f32.mrb[0].mxu0
    %834 = vmatprep.mubr.bf16.mxu0 0
    %835 = vmatmul.mubr.bf16.gmra.mrb[0].mxu0 %v679
    %v836 = vpop.f32.mrb[0].mxu0
    %v837 = vadd.f32 %v704, %v836
    %v838 = vpop.f32.mrb[0].mxu0
    %v839 = vpop.f32.mrb[0].mxu0
    %v840 = vadd.f32 %v704, %v839
    %v841 = vpop.f32.mrb[0].mxu0
    %842 = vmatprep.mubr.bf16.mxu0 0
    %843 = vmatmul.mubr.bf16.gmra.mrb[0].mxu0 %v680
    %v844 = vpop.f32.mrb[0].mxu0
    %v845 = vadd.f32 %v704, %v844
    %v846 = vpop.f32.mrb[0].mxu0
    %v847 = vpop.f32.mrb[0].mxu0
    %v848 = vadd.f32 %v704, %v847
    %v849 = vpop.f32.mrb[0].mxu0
    %850 = vdwg.mxu0
    %v851 = vadd.f32 %v789, %v463
    %v852 = vadd.f32 %v792, %v464
    %v853 = vadd.f32 %v797, %v465
    %v854 = vadd.f32 %v800, %v466
    %v855 = vadd.f32 %v805, %v467
    %v856 = vadd.f32 %v808, %v468
    %v857 = vadd.f32 %v813, %v469
    %v858 = vadd.f32 %v816, %v470
    %v859 = vadd.f32 %v821, %v471
    %v860 = vadd.f32 %v824, %v472
    %v861 = vadd.f32 %v829, %v473
    %v862 = vadd.f32 %v832, %v474
    %v863 = vadd.f32 %v837, %v475
    %v864 = vadd.f32 %v840, %v476
    %v865 = vadd.f32 %v845, %v477
    %v866 = vadd.f32 %v848, %v478
    %v867 = vmax.f32 %v851, 0.0
    %v868 = vmax.f32 %v852, 0.0
    %v869 = vmax.f32 %v853, 0.0
    %v870 = vmax.f32 %v854, 0.0
    %v871 = vmax.f32 %v855, 0.0
    %v872 = vmax.f32 %v856, 0.0
    %v873 = vmax.f32 %v857, 0.0
    %v874 = vmax.f32 %v858, 0.0
    %v875 = vmax.f32 %v859, 0.0
    %v876 = vmax.f32 %v860, 0.0
    %v877 = vmax.f32 %v861, 0.0
    %v878 = vmax.f32 %v862, 0.0
    %v879 = vmax.f32 %v863, 0.0
    %v880 = vmax.f32 %v864, 0.0
    %v881 = vmax.f32 %v865, 0.0
    %v882 = vmax.f32 %v866, 0.0
    %883 = vst [vmem:[#allocation8] sm:$0xff] %v867
    %884 = vst [vmem:[#allocation8 + $0x8] sm:$0xff] %v868
    %885 = vst [vmem:[#allocation8 + $0x10] sm:$0xff] %v869
    %886 = vst [vmem:[#allocation8 + $0x18] sm:$0xff] %v870
    %887 = vst [vmem:[#allocation8 + $0x20] sm:$0xff] %v871
    %888 = vst [vmem:[#allocation8 + $0x28] sm:$0xff] %v872
    %889 = vst [vmem:[#allocation8 + $0x30] sm:$0xff] %v873
    %890 = vst [vmem:[#allocation8 + $0x38] sm:$0xff] %v874
    %891 = vst [vmem:[#allocation8 + $0x40] sm:$0xff] %v875
    %892 = vst [vmem:[#allocation8 + $0x48] sm:$0xff] %v876
    %893 = vst [vmem:[#allocation8 + $0x50] sm:$0xff] %v877
    %894 = vst [vmem:[#allocation8 + $0x58] sm:$0xff] %v878
    %895 = vst [vmem:[#allocation8 + $0x60] sm:$0xff] %v879
    %896 = vst [vmem:[#allocation8 + $0x68] sm:$0xff] %v880
    %897 = vst [vmem:[#allocation8 + $0x70] sm:$0xff] %v881
    %898 = vst [vmem:[#allocation8 + $0x78] sm:$0xff] %v882
    // Predicated region
    $region34: #{tpu_custom_call.1} parent=1 // pred_check
      _
    $region35: #{tpu_custom_call.1} parent=1 // pred_check_branch
      %900 = sbr.rel (0) target = $region37
    $region36: #{tpu_custom_call.1} parent=1 // pred_region
      %s902 = ssub.s32 2048, 2048
      %903 = vsyncadd [#allocation4], %s902
      %s904 = sshll.u32 [#allocation8], 4
      %s905 = int_to_ptr.vmem [resolvable:$true] %s904
      %910 = dma.vmem_to_hbm [thread:$0]  %s905, 2048, %s5, [#allocation4], 128, 128, 8
    $region37: #{tpu_custom_call.1} parent=1 // pred_fallthru
      _
    // Predicated region
    $region38: #{tpu_custom_call.1} parent=1 // pred_check
      _
    $region39: #{tpu_custom_call.1} parent=1 // pred_check_branch
      %912 = sbr.rel (0) target = $region41
    $region40: #{tpu_custom_call.1} parent=1 // pred_region
      %913 = dma.done [#allocation4], 2048
    $region41: #{tpu_custom_call.1} parent=1 // pred_fallthru
      _
    %914 = vsyncpa [#allocation3], 1
    %915 = vsyncpa [#allocation6], 1
    %916 = vsyncpa [#allocation4], 1

</llo_original>
